<compile_context>
chip_gen: v7x
topology: tpu7x:2x2x1
jax: 0.10.0
libtpu: 0.0.40
codegen_flags: <defaults>
</compile_context>

<pallas_src>
import functools

import jax
import jax.numpy as jnp
from jax.experimental import pallas as pl
from jax.experimental.pallas import tpu as pltpu


def _gcn_kernel(x_ref, at_ref, w_ref, b_ref, o_ref, hcat_ref, *,
                order, c_in, c_out, n_v, t_l, t_n, c_grp, v_chunk, flat_out):
    """Fused graph hops + concat + 1x1 conv for one (sample-tile, time-tile).

    x_ref:    (TN, C, V, TL)         input block, native NCHW (no wrapper transpose)
    at_ref:   (V, V)                 A^T  (hop == plain matmul A^T @ x_c)
    w_ref:    (c_out, (order+1)*C)   original 1x1-conv weight, un-split
    b_ref:    (c_out, 1)             bias (f32)
    o_ref:    (TN, c_out, V*TL) if flat_out else (TN, c_out, V, TL)
    hcat_ref: ((order+1)*C, V, TL)   VMEM scratch holding [x, xA, ..., xA^order]
    """
    a_t = at_ref[...]
    w = w_ref[...]
    bias = b_ref[...]
    dt = hcat_ref.dtype

    for s in range(t_n):
        # ---- graph hops: channel-batched (V,V)@(V, CG*TL) GEMMs --------------
        for c0 in range(0, c_in, c_grp):
            cg = min(c_grp, c_in - c0)
            tiles = [x_ref[s, c0 + j] for j in range(cg)]           # (V, TL) each
            for j in range(cg):
                hcat_ref[c0 + j] = tiles[j].astype(dt)              # hop 0 = x
            xg = tiles[0] if cg == 1 else jnp.concatenate(tiles, axis=-1)
            for k in range(1, order + 1):
                xg = jnp.dot(a_t, xg, preferred_element_type=jnp.float32)
                xg = xg.astype(dt)       # keep bf16 hop chains bf16 on the MXU
                for j in range(cg):
                    hcat_ref[k * c_in + c0 + j] = xg[:, j * t_l:(j + 1) * t_l]

        # ---- fused concat + 1x1 conv: one (c_out,C')@(C', VC*TL) GEMM / chunk -
        for v0 in range(0, n_v, v_chunk):
            vc = min(v_chunk, n_v - v0)
            slab = hcat_ref[:, v0:v0 + vc, :]                       # (C', VC, TL)
            cols = [slab[:, i, :] for i in range(vc)]               # (C', TL) each
            rhs = cols[0] if vc == 1 else jnp.concatenate(cols, axis=-1)
            acc = jnp.dot(w, rhs, preferred_element_type=jnp.float32) + bias
            acc = acc.astype(o_ref.dtype)
            if flat_out:
                # lane-dense contiguous slab store: columns v0*L .. (v0+vc)*L
                o_ref[s, :, v0 * t_l:(v0 + vc) * t_l] = acc
            else:
                for i in range(vc):
                    o_ref[s, :, v0 + i, :] = acc[:, i * t_l:(i + 1) * t_l]
        # TODO(synk): F.dropout is identity in eval mode (training=False); no RNG.


def _vmem_need_bytes(tn, tl, c_in, c_out, n_v, order, isz):
    cpr = (order + 1) * c_in
    blocks = 2 * tn * (c_in + c_out) * n_v * tl * isz      # double-buffered in/out
    scratch = cpr * n_v * tl * isz                         # hcat scratch
    params = 2 * (n_v * n_v + c_out * cpr + c_out) * 4     # A^T, W, b blocks
    temps = (order + 2) * n_v * max(tl, 512) * 4           # hop/mix register slack
    return blocks + scratch + params + temps + (2 << 20)


def _choose_tiles(n, c_in, c_out, n_v, n_l, order, isz, budget):
    need = functools.partial(_vmem_need_bytes, c_in=c_in, c_out=c_out,
                             n_v=n_v, order=order, isz=isz)
    # Time tile: whole axis if it fits (enables the lane-dense flat-output path),
    # else the largest multiple of 128 that fits (cdiv grid handles the tail).
    if need(tn=1, tl=n_l) <= budget:
        tl = n_l
    else:
        tl = min(128, n_l)
        while tl + 128 < n_l and need(tn=1, tl=tl + 128) <= budget:
            tl += 128
    l_steps = -(-n_l // tl)
    # Sample tile: widen along N when L is small so each grid step moves a large
    # slab, but keep >= 2 grid steps when possible so both v7x cores get work.
    cap = n if (l_steps >= 2 or n < 2) else max(1, n // 2)
    tn = 1
    for d in range(1, n + 1):
        if n % d == 0 and d <= cap and need(tn=d, tl=tl) <= budget:
            tn = d
    return tn, tl


def gcn_forward(x, A, W, b, *, order=2):
    """x: (N, C, V, L), A: (V, V), W: (c_out, (order+1)*C), b: (c_out,)."""
    n, c_in, n_v, n_l = x.shape
    c_out = W.shape[0]
    cpr = (order + 1) * c_in
    assert order >= 1
    assert W.shape[1] == cpr
    assert A.shape == (n_v, n_v)

    isz = jnp.dtype(x.dtype).itemsize
    try:
        cap_bytes = int(pltpu.get_tpu_info().vmem_capacity_bytes)
    except Exception:
        cap_bytes = 64 << 20                       # v7x-safe fallback
    budget = cap_bytes * 3 // 4                    # ~48 MiB v7x, ~96 MiB v5e/v6e

    tn, tl = _choose_tiles(n, c_in, c_out, n_v, n_l, order, isz, budget)
    flat_out = (tl == n_l)
    # hop channel-group: keep the hop rhs a few hundred lanes wide but bounded.
    c_grp = max(1, min(c_in, max(1, 512 // tl),
                       max(1, (4 << 20) // (n_v * tl * isz))))
    # mix v-chunk: merge enough node rows per GEMM to reach ~2 lane tiles.
    v_chunk = max(1, min(n_v, max(1, 256 // tl)))
    need = _vmem_need_bytes(tn, tl, c_in, c_out, n_v, order, isz)
    vmem_limit = int(min(budget, max(32 << 20, need + (8 << 20))))

    a_t = jnp.asarray(A.T, dtype=x.dtype)          # hop == A^T @ x_c (cast hoisted)
    w2 = jnp.asarray(W, dtype=x.dtype)             # original layout, no transpose
    b2 = jnp.asarray(b, dtype=jnp.float32).reshape(c_out, 1)

    grid = (n // tn, -(-n_l // tl))
    in_specs = [
        pl.BlockSpec((tn, c_in, n_v, tl), lambda i, t: (i, 0, 0, t)),
        pl.BlockSpec((n_v, n_v), lambda i, t: (0, 0)),
        pl.BlockSpec((c_out, cpr), lambda i, t: (0, 0)),
        pl.BlockSpec((c_out, 1), lambda i, t: (0, 0)),
    ]
    if flat_out:
        out_shape = jax.ShapeDtypeStruct((n, c_out, n_v * n_l), x.dtype)
        out_spec = pl.BlockSpec((tn, c_out, n_v * tl), lambda i, t: (i, 0, 0))
    else:
        out_shape = jax.ShapeDtypeStruct((n, c_out, n_v, n_l), x.dtype)
        out_spec = pl.BlockSpec((tn, c_out, n_v, tl), lambda i, t: (i, 0, 0, t))

    y = pl.pallas_call(
        functools.partial(_gcn_kernel, order=order, c_in=c_in, c_out=c_out,
                          n_v=n_v, t_l=tl, t_n=tn, c_grp=c_grp,
                          v_chunk=v_chunk, flat_out=flat_out),
        out_shape=out_shape,
        grid_spec=pltpu.PrefetchScalarGridSpec(
            num_scalar_prefetch=0,
            grid=grid,
            in_specs=in_specs,
            out_specs=out_spec,
            scratch_shapes=[pltpu.VMEM((cpr, n_v, tl), x.dtype)],
        ),
        compiler_params=pltpu.CompilerParams(
            dimension_semantics=("parallel", "parallel"),
            vmem_limit_bytes=vmem_limit),
    )(x, a_t, w2, b2)

    if flat_out:
        y = y.reshape(n, c_out, n_v, n_l)          # free row-major un-flatten
    return y


def gcn_reference(x, A, W, b, *, order=2):
    hp = jax.lax.Precision.HIGHEST
    outs = [x]
    xk = x
    for _ in range(order):
        xk = jnp.einsum('ncvl,vw->ncwl', xk, A, precision=hp)
        outs.append(xk)
    h = jnp.concatenate(outs, axis=1)
    y = jnp.einsum('oc,ncvl->novl', W, h, precision=hp) + b.reshape(1, -1, 1, 1)
    return y


if __name__ == "__main__":
    N, C, V, L = 2, 4, 16, 16
    order = 2
    c_out = 8

    key = jax.random.PRNGKey(0)
    kx, ka, kw, kb = jax.random.split(key, 4)
    x = jax.random.normal(kx, (N, C, V, L), dtype=jnp.float32)
    A = jax.random.uniform(ka, (V, V), dtype=jnp.float32)
    A = A / jnp.sum(A, axis=1, keepdims=True)      # row-normalized transition
    W = jax.random.normal(kw, (c_out, (order + 1) * C), dtype=jnp.float32) * 0.1
    b = jax.random.normal(kb, (c_out,), dtype=jnp.float32) * 0.1

    out = gcn_forward(x, A, W, b, order=order)
    out = jax.block_until_ready(out)

    ref = gcn_reference(x, A, W, b, order=order)
    assert out.shape == (N, c_out, V, L)
    assert jnp.allclose(out, ref, atol=2e-3, rtol=2e-3), (
        float(jnp.max(jnp.abs(out - ref))))

    print("KERNEL_OK")
</pallas_src>

<mosaic_0001>
module attributes {stable_mosaic.version = 11 : i64} {
  func.func @_gcn_kernel(%arg0: i32, %arg1: i32, %arg2: memref<1x4x16x16xf32, #tpu.memory_space<vmem>>, %arg3: memref<16x16xf32, #tpu.memory_space<vmem>>, %arg4: memref<8x12xf32, #tpu.memory_space<vmem>>, %arg5: memref<8x1xf32, #tpu.memory_space<vmem>>, %arg6: memref<1x8x256xf32, #tpu.memory_space<vmem>>, %arg7: memref<12x16x16xf32, #tpu.memory_space<vmem>>) attributes {dimension_semantics = [#tpu.dimension_semantics<parallel>, #tpu.dimension_semantics<parallel>], iteration_bounds = array<i64: 2, 1>, scalar_prefetch = 0 : i64, scratch_operands = 1 : i64, tpu.core_type = #tpu.core_type<tc>, window_params = [{transform_indices = @transform_0, window_bounds = array<i64: 1, 4, 16, 16>}, {pipeline_mode = #tpu.pipeline_mode<synchronous>, transform_indices = @transform_1, window_bounds = array<i64: 16, 16>}, {pipeline_mode = #tpu.pipeline_mode<synchronous>, transform_indices = @transform_2, window_bounds = array<i64: 8, 12>}, {pipeline_mode = #tpu.pipeline_mode<synchronous>, transform_indices = @transform_3, window_bounds = array<i64: 8, 1>}, {transform_indices = @transform_4, window_bounds = array<i64: 1, 8, 256>}]} {
    %c0 = arith.constant 0 : index
    %c0_0 = arith.constant 0 : index
    %0 = vector.load %arg3[%c0, %c0_0] : memref<16x16xf32, #tpu.memory_space<vmem>>, vector<16x16xf32>
    %c0_1 = arith.constant 0 : index
    %c0_2 = arith.constant 0 : index
    %1 = vector.load %arg4[%c0_1, %c0_2] : memref<8x12xf32, #tpu.memory_space<vmem>>, vector<8x12xf32>
    %c0_3 = arith.constant 0 : index
    %c0_4 = arith.constant 0 : index
    %2 = vector.load %arg5[%c0_3, %c0_4] : memref<8x1xf32, #tpu.memory_space<vmem>>, vector<8x1xf32>
    %c0_5 = arith.constant 0 : index
    %c0_6 = arith.constant 0 : index
    %c0_7 = arith.constant 0 : index
    %c0_8 = arith.constant 0 : index
    %3 = vector.load %arg2[%c0_5, %c0_6, %c0_7, %c0_8] : memref<1x4x16x16xf32, #tpu.memory_space<vmem>>, vector<1x1x16x16xf32>
    %4 = vector.shape_cast %3 : vector<1x1x16x16xf32> to vector<16x16xf32>
    %c0_9 = arith.constant 0 : index
    %c1 = arith.constant 1 : index
    %c0_10 = arith.constant 0 : index
    %c0_11 = arith.constant 0 : index
    %5 = vector.load %arg2[%c0_9, %c1, %c0_10, %c0_11] : memref<1x4x16x16xf32, #tpu.memory_space<vmem>>, vector<1x1x16x16xf32>
    %6 = vector.shape_cast %5 : vector<1x1x16x16xf32> to vector<16x16xf32>
    %c0_12 = arith.constant 0 : index
    %c2 = arith.constant 2 : index
    %c0_13 = arith.constant 0 : index
    %c0_14 = arith.constant 0 : index
    %7 = vector.load %arg2[%c0_12, %c2, %c0_13, %c0_14] : memref<1x4x16x16xf32, #tpu.memory_space<vmem>>, vector<1x1x16x16xf32>
    %8 = vector.shape_cast %7 : vector<1x1x16x16xf32> to vector<16x16xf32>
    %c0_15 = arith.constant 0 : index
    %c3 = arith.constant 3 : index
    %c0_16 = arith.constant 0 : index
    %c0_17 = arith.constant 0 : index
    %9 = vector.load %arg2[%c0_15, %c3, %c0_16, %c0_17] : memref<1x4x16x16xf32, #tpu.memory_space<vmem>>, vector<1x1x16x16xf32>
    %10 = vector.shape_cast %9 : vector<1x1x16x16xf32> to vector<16x16xf32>
    %c0_18 = arith.constant 0 : index
    %c0_19 = arith.constant 0 : index
    %c0_20 = arith.constant 0 : index
    %11 = vector.load %arg7[%c0_18, %c0_19, %c0_20] : memref<12x16x16xf32, #tpu.memory_space<vmem>>, vector<1x16x16xf32>
    %12 = vector.shape_cast %11 : vector<1x16x16xf32> to vector<16x16xf32>
    %13 = vector.shape_cast %4 : vector<16x16xf32> to vector<1x16x16xf32>
    tpu.vector_store %arg7[%c0_18, %c0_19, %c0_20], %13 {strides = array<i32>} : memref<12x16x16xf32, #tpu.memory_space<vmem>>, vector<1x16x16xf32>,
    %c1_21 = arith.constant 1 : index
    %c0_22 = arith.constant 0 : index
    %c0_23 = arith.constant 0 : index
    %14 = vector.load %arg7[%c1_21, %c0_22, %c0_23] : memref<12x16x16xf32, #tpu.memory_space<vmem>>, vector<1x16x16xf32>
    %15 = vector.shape_cast %14 : vector<1x16x16xf32> to vector<16x16xf32>
    %16 = vector.shape_cast %6 : vector<16x16xf32> to vector<1x16x16xf32>
    tpu.vector_store %arg7[%c1_21, %c0_22, %c0_23], %16 {strides = array<i32>} : memref<12x16x16xf32, #tpu.memory_space<vmem>>, vector<1x16x16xf32>,
    %c2_24 = arith.constant 2 : index
    %c0_25 = arith.constant 0 : index
    %c0_26 = arith.constant 0 : index
    %17 = vector.load %arg7[%c2_24, %c0_25, %c0_26] : memref<12x16x16xf32, #tpu.memory_space<vmem>>, vector<1x16x16xf32>
    %18 = vector.shape_cast %17 : vector<1x16x16xf32> to vector<16x16xf32>
    %19 = vector.shape_cast %8 : vector<16x16xf32> to vector<1x16x16xf32>
    tpu.vector_store %arg7[%c2_24, %c0_25, %c0_26], %19 {strides = array<i32>} : memref<12x16x16xf32, #tpu.memory_space<vmem>>, vector<1x16x16xf32>,
    %c3_27 = arith.constant 3 : index
    %c0_28 = arith.constant 0 : index
    %c0_29 = arith.constant 0 : index
    %20 = vector.load %arg7[%c3_27, %c0_28, %c0_29] : memref<12x16x16xf32, #tpu.memory_space<vmem>>, vector<1x16x16xf32>
    %21 = vector.shape_cast %20 : vector<1x16x16xf32> to vector<16x16xf32>
    %22 = vector.shape_cast %10 : vector<16x16xf32> to vector<1x16x16xf32>
    tpu.vector_store %arg7[%c3_27, %c0_28, %c0_29], %22 {strides = array<i32>} : memref<12x16x16xf32, #tpu.memory_space<vmem>>, vector<1x16x16xf32>,
    %23 = tpu.concatenate %4, %6, %8, %10 in 1 : vector<16x16xf32>, vector<16x16xf32>, vector<16x16xf32>, vector<16x16xf32> -> vector<16x64xf32>
    %cst = arith.constant dense<0.000000e+00> : vector<16x64xf32>
    %24 = tpu.matmul %0, %23, %cst {dimension_numbers = #tpu.dot_dimension_numbers<[1], [0], [0], [1], [0, 0, 1, 1], [], []>} : vector<16x16xf32>, vector<16x64xf32>, vector<16x64xf32> -> vector<16x64xf32>
    %25 = vector.extract_strided_slice %24 {offsets = [0, 0], sizes = [16, 16], strides = [1, 1]} : vector<16x64xf32> to vector<16x16xf32>
    %c4 = arith.constant 4 : index
    %c0_30 = arith.constant 0 : index
    %c0_31 = arith.constant 0 : index
    %26 = vector.load %arg7[%c4, %c0_30, %c0_31] : memref<12x16x16xf32, #tpu.memory_space<vmem>>, vector<1x16x16xf32>
    %27 = vector.shape_cast %26 : vector<1x16x16xf32> to vector<16x16xf32>
    %28 = vector.shape_cast %25 : vector<16x16xf32> to vector<1x16x16xf32>
    tpu.vector_store %arg7[%c4, %c0_30, %c0_31], %28 {strides = array<i32>} : memref<12x16x16xf32, #tpu.memory_space<vmem>>, vector<1x16x16xf32>,
    %29 = vector.extract_strided_slice %24 {offsets = [0, 16], sizes = [16, 16], strides = [1, 1]} : vector<16x64xf32> to vector<16x16xf32>
    %c5 = arith.constant 5 : index
    %c0_32 = arith.constant 0 : index
    %c0_33 = arith.constant 0 : index
    %30 = vector.load %arg7[%c5, %c0_32, %c0_33] : memref<12x16x16xf32, #tpu.memory_space<vmem>>, vector<1x16x16xf32>
    %31 = vector.shape_cast %30 : vector<1x16x16xf32> to vector<16x16xf32>
    %32 = vector.shape_cast %29 : vector<16x16xf32> to vector<1x16x16xf32>
    tpu.vector_store %arg7[%c5, %c0_32, %c0_33], %32 {strides = array<i32>} : memref<12x16x16xf32, #tpu.memory_space<vmem>>, vector<1x16x16xf32>,
    %33 = vector.extract_strided_slice %24 {offsets = [0, 32], sizes = [16, 16], strides = [1, 1]} : vector<16x64xf32> to vector<16x16xf32>
    %c6 = arith.constant 6 : index
    %c0_34 = arith.constant 0 : index
    %c0_35 = arith.constant 0 : index
    %34 = vector.load %arg7[%c6, %c0_34, %c0_35] : memref<12x16x16xf32, #tpu.memory_space<vmem>>, vector<1x16x16xf32>
    %35 = vector.shape_cast %34 : vector<1x16x16xf32> to vector<16x16xf32>
    %36 = vector.shape_cast %33 : vector<16x16xf32> to vector<1x16x16xf32>
    tpu.vector_store %arg7[%c6, %c0_34, %c0_35], %36 {strides = array<i32>} : memref<12x16x16xf32, #tpu.memory_space<vmem>>, vector<1x16x16xf32>,
    %37 = vector.extract_strided_slice %24 {offsets = [0, 48], sizes = [16, 16], strides = [1, 1]} : vector<16x64xf32> to vector<16x16xf32>
    %c7 = arith.constant 7 : index
    %c0_36 = arith.constant 0 : index
    %c0_37 = arith.constant 0 : index
    %38 = vector.load %arg7[%c7, %c0_36, %c0_37] : memref<12x16x16xf32, #tpu.memory_space<vmem>>, vector<1x16x16xf32>
    %39 = vector.shape_cast %38 : vector<1x16x16xf32> to vector<16x16xf32>
    %40 = vector.shape_cast %37 : vector<16x16xf32> to vector<1x16x16xf32>
    tpu.vector_store %arg7[%c7, %c0_36, %c0_37], %40 {strides = array<i32>} : memref<12x16x16xf32, #tpu.memory_space<vmem>>, vector<1x16x16xf32>,
    %cst_38 = arith.constant dense<0.000000e+00> : vector<16x64xf32>
    %41 = tpu.matmul %0, %24, %cst_38 {dimension_numbers = #tpu.dot_dimension_numbers<[1], [0], [0], [1], [0, 0, 1, 1], [], []>} : vector<16x16xf32>, vector<16x64xf32>, vector<16x64xf32> -> vector<16x64xf32>
    %42 = vector.extract_strided_slice %41 {offsets = [0, 0], sizes = [16, 16], strides = [1, 1]} : vector<16x64xf32> to vector<16x16xf32>
    %c8 = arith.constant 8 : index
    %c0_39 = arith.constant 0 : index
    %c0_40 = arith.constant 0 : index
    %43 = vector.load %arg7[%c8, %c0_39, %c0_40] : memref<12x16x16xf32, #tpu.memory_space<vmem>>, vector<1x16x16xf32>
    %44 = vector.shape_cast %43 : vector<1x16x16xf32> to vector<16x16xf32>
    %45 = vector.shape_cast %42 : vector<16x16xf32> to vector<1x16x16xf32>
    tpu.vector_store %arg7[%c8, %c0_39, %c0_40], %45 {strides = array<i32>} : memref<12x16x16xf32, #tpu.memory_space<vmem>>, vector<1x16x16xf32>,
    %46 = vector.extract_strided_slice %41 {offsets = [0, 16], sizes = [16, 16], strides = [1, 1]} : vector<16x64xf32> to vector<16x16xf32>
    %c9 = arith.constant 9 : index
    %c0_41 = arith.constant 0 : index
    %c0_42 = arith.constant 0 : index
    %47 = vector.load %arg7[%c9, %c0_41, %c0_42] : memref<12x16x16xf32, #tpu.memory_space<vmem>>, vector<1x16x16xf32>
    %48 = vector.shape_cast %47 : vector<1x16x16xf32> to vector<16x16xf32>
    %49 = vector.shape_cast %46 : vector<16x16xf32> to vector<1x16x16xf32>
    tpu.vector_store %arg7[%c9, %c0_41, %c0_42], %49 {strides = array<i32>} : memref<12x16x16xf32, #tpu.memory_space<vmem>>, vector<1x16x16xf32>,
    %50 = vector.extract_strided_slice %41 {offsets = [0, 32], sizes = [16, 16], strides = [1, 1]} : vector<16x64xf32> to vector<16x16xf32>
    %c10 = arith.constant 10 : index
    %c0_43 = arith.constant 0 : index
    %c0_44 = arith.constant 0 : index
    %51 = vector.load %arg7[%c10, %c0_43, %c0_44] : memref<12x16x16xf32, #tpu.memory_space<vmem>>, vector<1x16x16xf32>
    %52 = vector.shape_cast %51 : vector<1x16x16xf32> to vector<16x16xf32>
    %53 = vector.shape_cast %50 : vector<16x16xf32> to vector<1x16x16xf32>
    tpu.vector_store %arg7[%c10, %c0_43, %c0_44], %53 {strides = array<i32>} : memref<12x16x16xf32, #tpu.memory_space<vmem>>, vector<1x16x16xf32>,
    %54 = vector.extract_strided_slice %41 {offsets = [0, 48], sizes = [16, 16], strides = [1, 1]} : vector<16x64xf32> to vector<16x16xf32>
    %c11 = arith.constant 11 : index
    %c0_45 = arith.constant 0 : index
    %c0_46 = arith.constant 0 : index
    %55 = vector.load %arg7[%c11, %c0_45, %c0_46] : memref<12x16x16xf32, #tpu.memory_space<vmem>>, vector<1x16x16xf32>
    %56 = vector.shape_cast %55 : vector<1x16x16xf32> to vector<16x16xf32>
    %57 = vector.shape_cast %54 : vector<16x16xf32> to vector<1x16x16xf32>
    tpu.vector_store %arg7[%c11, %c0_45, %c0_46], %57 {strides = array<i32>} : memref<12x16x16xf32, #tpu.memory_space<vmem>>, vector<1x16x16xf32>,
    %c0_47 = arith.constant 0 : index
    %c0_48 = arith.constant 0 : index
    %c0_49 = arith.constant 0 : index
    %58 = vector.load %arg7[%c0_47, %c0_48, %c0_49] : memref<12x16x16xf32, #tpu.memory_space<vmem>>, vector<12x16x16xf32>
    %59 = vector.extract_strided_slice %58 {offsets = [0, 0, 0], sizes = [12, 1, 16], strides = [1, 1, 1]} : vector<12x16x16xf32> to vector<12x1x16xf32>
    %60 = vector.shape_cast %59 : vector<12x1x16xf32> to vector<12x16xf32>
    %61 = vector.extract_strided_slice %58 {offsets = [0, 1, 0], sizes = [12, 1, 16], strides = [1, 1, 1]} : vector<12x16x16xf32> to vector<12x1x16xf32>
    %62 = vector.shape_cast %61 : vector<12x1x16xf32> to vector<12x16xf32>
    %63 = vector.extract_strided_slice %58 {offsets = [0, 2, 0], sizes = [12, 1, 16], strides = [1, 1, 1]} : vector<12x16x16xf32> to vector<12x1x16xf32>
    %64 = vector.shape_cast %63 : vector<12x1x16xf32> to vector<12x16xf32>
    %65 = vector.extract_strided_slice %58 {offsets = [0, 3, 0], sizes = [12, 1, 16], strides = [1, 1, 1]} : vector<12x16x16xf32> to vector<12x1x16xf32>
    %66 = vector.shape_cast %65 : vector<12x1x16xf32> to vector<12x16xf32>
    %67 = vector.extract_strided_slice %58 {offsets = [0, 4, 0], sizes = [12, 1, 16], strides = [1, 1, 1]} : vector<12x16x16xf32> to vector<12x1x16xf32>
    %68 = vector.shape_cast %67 : vector<12x1x16xf32> to vector<12x16xf32>
    %69 = vector.extract_strided_slice %58 {offsets = [0, 5, 0], sizes = [12, 1, 16], strides = [1, 1, 1]} : vector<12x16x16xf32> to vector<12x1x16xf32>
    %70 = vector.shape_cast %69 : vector<12x1x16xf32> to vector<12x16xf32>
    %71 = vector.extract_strided_slice %58 {offsets = [0, 6, 0], sizes = [12, 1, 16], strides = [1, 1, 1]} : vector<12x16x16xf32> to vector<12x1x16xf32>
    %72 = vector.shape_cast %71 : vector<12x1x16xf32> to vector<12x16xf32>
    %73 = vector.extract_strided_slice %58 {offsets = [0, 7, 0], sizes = [12, 1, 16], strides = [1, 1, 1]} : vector<12x16x16xf32> to vector<12x1x16xf32>
    %74 = vector.shape_cast %73 : vector<12x1x16xf32> to vector<12x16xf32>
    %75 = vector.extract_strided_slice %58 {offsets = [0, 8, 0], sizes = [12, 1, 16], strides = [1, 1, 1]} : vector<12x16x16xf32> to vector<12x1x16xf32>
    %76 = vector.shape_cast %75 : vector<12x1x16xf32> to vector<12x16xf32>
    %77 = vector.extract_strided_slice %58 {offsets = [0, 9, 0], sizes = [12, 1, 16], strides = [1, 1, 1]} : vector<12x16x16xf32> to vector<12x1x16xf32>
    %78 = vector.shape_cast %77 : vector<12x1x16xf32> to vector<12x16xf32>
    %79 = vector.extract_strided_slice %58 {offsets = [0, 10, 0], sizes = [12, 1, 16], strides = [1, 1, 1]} : vector<12x16x16xf32> to vector<12x1x16xf32>
    %80 = vector.shape_cast %79 : vector<12x1x16xf32> to vector<12x16xf32>
    %81 = vector.extract_strided_slice %58 {offsets = [0, 11, 0], sizes = [12, 1, 16], strides = [1, 1, 1]} : vector<12x16x16xf32> to vector<12x1x16xf32>
    %82 = vector.shape_cast %81 : vector<12x1x16xf32> to vector<12x16xf32>
    %83 = vector.extract_strided_slice %58 {offsets = [0, 12, 0], sizes = [12, 1, 16], strides = [1, 1, 1]} : vector<12x16x16xf32> to vector<12x1x16xf32>
    %84 = vector.shape_cast %83 : vector<12x1x16xf32> to vector<12x16xf32>
    %85 = vector.extract_strided_slice %58 {offsets = [0, 13, 0], sizes = [12, 1, 16], strides = [1, 1, 1]} : vector<12x16x16xf32> to vector<12x1x16xf32>
    %86 = vector.shape_cast %85 : vector<12x1x16xf32> to vector<12x16xf32>
    %87 = vector.extract_strided_slice %58 {offsets = [0, 14, 0], sizes = [12, 1, 16], strides = [1, 1, 1]} : vector<12x16x16xf32> to vector<12x1x16xf32>
    %88 = vector.shape_cast %87 : vector<12x1x16xf32> to vector<12x16xf32>
    %89 = vector.extract_strided_slice %58 {offsets = [0, 15, 0], sizes = [12, 1, 16], strides = [1, 1, 1]} : vector<12x16x16xf32> to vector<12x1x16xf32>
    %90 = vector.shape_cast %89 : vector<12x1x16xf32> to vector<12x16xf32>
    %91 = tpu.concatenate %60, %62, %64, %66, %68, %70, %72, %74, %76, %78, %80, %82, %84, %86, %88, %90 in 1 : vector<12x16xf32>, vector<12x16xf32>, vector<12x16xf32>, vector<12x16xf32>, vector<12x16xf32>, vector<12x16xf32>, vector<12x16xf32>, vector<12x16xf32>, vector<12x16xf32>, vector<12x16xf32>, vector<12x16xf32>, vector<12x16xf32>, vector<12x16xf32>, vector<12x16xf32>, vector<12x16xf32>, vector<12x16xf32> -> vector<12x256xf32>
    %cst_50 = arith.constant dense<0.000000e+00> : vector<8x256xf32>
    %92 = tpu.matmul %1, %91, %cst_50 {dimension_numbers = #tpu.dot_dimension_numbers<[1], [0], [0], [1], [0, 0, 1, 1], [], []>} : vector<8x12xf32>, vector<12x256xf32>, vector<8x256xf32> -> vector<8x256xf32>
    %93 = vector.broadcast %2 : vector<8x1xf32> to vector<8x256xf32>
    %94 = arith.addf %92, %93 : vector<8x256xf32>
    %c0_51 = arith.constant 0 : index
    %c0_52 = arith.constant 0 : index
    %c0_53 = arith.constant 0 : index
    %95 = vector.load %arg6[%c0_51, %c0_52, %c0_53] : memref<1x8x256xf32, #tpu.memory_space<vmem>>, vector<1x8x256xf32>
    %96 = vector.shape_cast %95 : vector<1x8x256xf32> to vector<8x256xf32>
    %97 = vector.shape_cast %94 : vector<8x256xf32> to vector<1x8x256xf32>
    tpu.vector_store %arg6[%c0_51, %c0_52, %c0_53], %97 {strides = array<i32>} : memref<1x8x256xf32, #tpu.memory_space<vmem>>, vector<1x8x256xf32>,
    return
  }
  func.func @transform_0(%arg0: i32, %arg1: i32) -> (i32, i32, i32, i32) {
    %c0_i32 = arith.constant 0 : i32
    %c0_i32_0 = arith.constant 0 : i32
    %c0_i32_1 = arith.constant 0 : i32
    return %arg0, %c0_i32, %c0_i32_0, %arg1 : i32, i32, i32, i32
  }
  func.func @transform_1(%arg0: i32, %arg1: i32) -> (i32, i32) {
    %c0_i32 = arith.constant 0 : i32
    %c0_i32_0 = arith.constant 0 : i32
    %c0_i32_1 = arith.constant 0 : i32
    return %c0_i32, %c0_i32_0 : i32, i32
  }
  func.func @transform_2(%arg0: i32, %arg1: i32) -> (i32, i32) {
    %c0_i32 = arith.constant 0 : i32
    %c0_i32_0 = arith.constant 0 : i32
    %c0_i32_1 = arith.constant 0 : i32
    return %c0_i32, %c0_i32_0 : i32, i32
  }
  func.func @transform_3(%arg0: i32, %arg1: i32) -> (i32, i32) {
    %c0_i32 = arith.constant 0 : i32
    %c0_i32_0 = arith.constant 0 : i32
    %c0_i32_1 = arith.constant 0 : i32
    return %c0_i32, %c0_i32_0 : i32, i32
  }
  func.func @transform_4(%arg0: i32, %arg1: i32) -> (i32, i32, i32) {
    %c0_i32 = arith.constant 0 : i32
    %c0_i32_0 = arith.constant 0 : i32
    %c0_i32_1 = arith.constant 0 : i32
    return %arg0, %c0_i32, %c0_i32_0 : i32, i32, i32
  }
}

</mosaic_0001>

<llo_original>
// kernel: tpu_custom_call.1
$region0: #{tpu_custom_call.1}
  #allocation0 [shape = 'u32[]', space=smem, size = 0x4, offset = 0x4, fixed_abs, tag = 'smem constant byte address 0x4 - core index']
  #allocation1 [shape = 'u32[144,128]{1,0:T(1,128)}', space=vmem, size = 0x12000, scoped, tag = 'internal scratch']
  #allocation2 [shape = 'f32[12,16,16]{2,1,0:T(8,128)}', space=vmem, size = 0x18000, scoped, tag = 'scratch operand']
  %s0 = inlined_call_operand.hbm [shape: f32[2,4,16,16], index: 0, kind: input, shape index: {}]
  %s1 = inlined_call_operand.hbm [shape: f32[16,16], index: 1, kind: input, shape index: {}]
  %s2 = inlined_call_operand.vmem [shape: f32[8,12], index: 2, kind: input, shape index: {}]
  %s3 = inlined_call_operand.vmem [shape: f32[8,1], index: 3, kind: input, shape index: {}]
  %s4 = inlined_call_operand.hbm [shape: f32[2,8,256], index: 4, kind: output, shape index: {}]
  %s5 = sld [smem:[#allocation0]]
  $region57: #{tpu_custom_call.1} parent=0
    _
  %s7 = ssub.s32 1, %s5
  %s8 = scalar_select 0, %s7, %s5
  $region1: #{tpu_custom_call.1} parent=0
    #allocation3 [shape = 'u8[65536]{0}', space=vmem, size = 0x10000, scoped, tag = 'input window, operand 0']
    #allocation4 [shape = 's32[2]{0}', space=sflag, size = 0x8, scoped, tag = 'scoped memory for tpu_custom_call.1']
    #allocation5 [shape = 's32[2]{0}', space=sflag, size = 0x8, scoped, tag = 'scoped memory for tpu_custom_call.1']
    #allocation6 [shape = 'u8[8192]{0}', space=vmem, size = 0x2000, scoped, tag = 'input window, operand 1, single buffered']
    #allocation7 [shape = 's32[1]{0}', space=sflag, size = 0x4, scoped, tag = 'scoped memory for tpu_custom_call.1']
    #allocation8 [shape = 'u8[16384]{0}', space=vmem, size = 0x4000, scoped, tag = 'output window, operand 0']
    %9 = vsyncpa [#allocation4], 0
    %s10 = scalar_lea.sflag [#allocation4], 1
    %11 = vsyncpa %s10, 0
    %12 = vsyncpa [#allocation7], 0
    %13 = vsyncpa [#allocation5], 0
    %s14 = scalar_lea.sflag [#allocation5], 1
    %15 = vsyncpa %s14, 0
    loop: start=0, step=1, limit=4
    $region2: #{tpu_custom_call.1} parent=1 // loop_pre_header
      _
    $region3: #{tpu_custom_call.1} parent=1 // loop_header
      %s17 = sphi 0, %s21
      %p18 = scmp.ge.s32.totalorder %s17, 4
      %s24 = sphi 0, %s36
      %s25 = sphi 0, %s32
      %s26 = sphi 0, %s24
      %s27 = sphi 0, %s25
      %s28 = sphi 0, %s26
      %s29 = sphi 0, %s27
      %s41 = sphi 0, %s43
      %s44 = sphi 0, %s41
      %s45 = sphi 0, %s44
      %s61 = sphi 0, %s45
      %s65 = sphi 0, %s65
      %s67 = sphi 0, %s65
      %s68 = sphi 0, %s67
      %s82 = sphi 0, %s68
      %s86 = sphi 0, %s86
      %s88 = sphi 0, %s86
      %s89 = sphi 0, %s88
      %s103 = sphi 0, %s89
      %s107 = sphi 0, %s107
      %s109 = sphi 0, %s107
      %s110 = sphi 0, %s109
      %s124 = sphi 0, %s110
      %s130 = sphi 0, %s132
      %s133 = sphi 0, %s130
      %s134 = sphi 0, %s133
      %s150 = sphi 0, %s134
    $region4: #{tpu_custom_call.1} parent=1 // loop_header_branch
      %20 = sbr.rel (%p18) target = $region8
    $region5: #{tpu_custom_call.1} parent=1 // loop_body
      %s22 = ssub.s32 %s17, 1
      %s23 = ssub.s32 %s17, 2
      %s30 = sadd.s32 1, %s25
      %p31 = scmp.ge.s32.totalorder %s30, 1
      %s32 = scalar_select %p31, 0, %s30
      %s33 = sadd.s32 1, %s24
      %s34 = scalar_select %p31, %s33, %s24
      %p35 = scmp.ge.s32.totalorder %s34, 2
      %s36 = scalar_select %p35, 0, %s34
      %s37 = ssub.s32 %s24, %s36
      %s38 = ssub.s32 %s25, %s32
      %s39 = sor.u32 %s37, %s38
      %p40 = scmp.eq.s32.totalorder %s39, 0
      %s42 = sadd.s32 %s41, 1
      %s43 = scalar_select %p40, %s41, %s42
      %p46 = pneg %p40
      %p47 = scmp.eq.s32.totalorder %s17, 1
      %p48 = por %p46, %p47
      %p49 = scmp.ne.s32.totalorder %s41, %s44
      %p50 = scmp.eq.s32.totalorder %s17, 0
      %p51 = por %p49, %p50
      %p52 = scmp.ne.s32.totalorder %s41, %s44
      %p53 = scmp.eq.s32.totalorder %s22, 1
      %p54 = por %p52, %p53
      %p55 = scmp.ne.s32.totalorder %s44, %s45
      %p56 = scmp.eq.s32.totalorder %s22, 0
      %p57 = por %p55, %p56
      %p58 = scmp.ne.s32.totalorder %s44, %s45
      %p59 = scmp.eq.s32.totalorder %s23, 1
      %p60 = por %p58, %p59
      %p62 = scmp.ne.s32.totalorder %s45, %s61
      %p63 = scmp.eq.s32.totalorder %s23, 0
      %p64 = por %p62, %p63
      %s66 = sadd.s32 %s65, 1
      %p69 = scmp.eq.s32.totalorder %s17, 1
      %p70 = scmp.ne.s32.totalorder %s65, %s67
      %p71 = scmp.eq.s32.totalorder %s17, 0
      %p72 = por %p70, %p71
      %p73 = scmp.ne.s32.totalorder %s65, %s67
      %p74 = scmp.eq.s32.totalorder %s22, 1
      %p75 = por %p73, %p74
      %p76 = scmp.ne.s32.totalorder %s67, %s68
      %p77 = scmp.eq.s32.totalorder %s22, 0
      %p78 = por %p76, %p77
      %p79 = scmp.ne.s32.totalorder %s67, %s68
      %p80 = scmp.eq.s32.totalorder %s23, 1
      %p81 = por %p79, %p80
      %p83 = scmp.ne.s32.totalorder %s68, %s82
      %p84 = scmp.eq.s32.totalorder %s23, 0
      %p85 = por %p83, %p84
      %s87 = sadd.s32 %s86, 1
      %p90 = scmp.eq.s32.totalorder %s17, 1
      %p91 = scmp.ne.s32.totalorder %s86, %s88
      %p92 = scmp.eq.s32.totalorder %s17, 0
      %p93 = por %p91, %p92
      %p94 = scmp.ne.s32.totalorder %s86, %s88
      %p95 = scmp.eq.s32.totalorder %s22, 1
      %p96 = por %p94, %p95
      %p97 = scmp.ne.s32.totalorder %s88, %s89
      %p98 = scmp.eq.s32.totalorder %s22, 0
      %p99 = por %p97, %p98
      %p100 = scmp.ne.s32.totalorder %s88, %s89
      %p101 = scmp.eq.s32.totalorder %s23, 1
      %p102 = por %p100, %p101
      %p104 = scmp.ne.s32.totalorder %s89, %s103
      %p105 = scmp.eq.s32.totalorder %s23, 0
      %p106 = por %p104, %p105
      %s108 = sadd.s32 %s107, 1
      %p111 = scmp.eq.s32.totalorder %s17, 1
      %p112 = scmp.ne.s32.totalorder %s107, %s109
      %p113 = scmp.eq.s32.totalorder %s17, 0
      %p114 = por %p112, %p113
      %p115 = scmp.ne.s32.totalorder %s107, %s109
      %p116 = scmp.eq.s32.totalorder %s22, 1
      %p117 = por %p115, %p116
      %p118 = scmp.ne.s32.totalorder %s109, %s110
      %p119 = scmp.eq.s32.totalorder %s22, 0
      %p120 = por %p118, %p119
      %p121 = scmp.ne.s32.totalorder %s109, %s110
      %p122 = scmp.eq.s32.totalorder %s23, 1
      %p123 = por %p121, %p122
      %p125 = scmp.ne.s32.totalorder %s110, %s124
      %p126 = scmp.eq.s32.totalorder %s23, 0
      %p127 = por %p125, %p126
      %s128 = ssub.s32 %s24, %s36
      %p129 = scmp.eq.s32.totalorder %s128, 0
      %s131 = sadd.s32 %s130, 1
      %s132 = scalar_select %p129, %s130, %s131
      %p135 = pneg %p129
      %p136 = scmp.eq.s32.totalorder %s17, 1
      %p137 = por %p135, %p136
      %p138 = scmp.ne.s32.totalorder %s130, %s133
      %p139 = scmp.eq.s32.totalorder %s17, 0
      %p140 = por %p138, %p139
      %p141 = scmp.ne.s32.totalorder %s130, %s133
      %p142 = scmp.eq.s32.totalorder %s22, 1
      %p143 = por %p141, %p142
      %p144 = scmp.ne.s32.totalorder %s133, %s134
      %p145 = scmp.eq.s32.totalorder %s22, 0
      %p146 = por %p144, %p145
      %p147 = scmp.ne.s32.totalorder %s133, %s134
      %p148 = scmp.eq.s32.totalorder %s23, 1
      %p149 = por %p147, %p148
      %p151 = scmp.ne.s32.totalorder %s134, %s150
      %p152 = scmp.eq.s32.totalorder %s23, 0
      %p153 = por %p151, %p152
      %p154 = scmp.le.s32.totalorder 1, %s17
      %p155 = scmp.lt.s32.totalorder %s17, 3
      %p156 = pnand %p154, %p155
      %p157 = pneg %p156
      // Predicated region
      $region9: #{tpu_custom_call.1} parent=5 // pred_check
        _
      $region10: #{tpu_custom_call.1} parent=5 // pred_check_branch
        %159 = sbr.rel (%p156) target = $region12
      $region11: #{tpu_custom_call.1} parent=5 // pred_region
        %s160 = ssub.s32 %s17, 1
        // Predicated region
        $region13: #{tpu_custom_call.1} parent=11 // pred_check
          %p161 = pneg %p78
        $region14: #{tpu_custom_call.1} parent=11 // pred_check_branch
          %163 = sbr.rel (%p161) target = $region16
        $region15: #{tpu_custom_call.1} parent=11 // pred_region
          %s165 = ssub.s32 256, 256
          %166 = vsyncadd [#allocation7], %s165
          %s167 = sshll.u32 [#allocation6], 4
          %s168 = int_to_ptr.vmem [resolvable:$true] %s167
          %173 = dma.hbm_to_vmem [thread:$0]  %s1, 256, %s168, [#allocation7], 128, 128, 8
        $region16: #{tpu_custom_call.1} parent=11 // pred_fallthru
          _
        // Predicated region
        $region17: #{tpu_custom_call.1} parent=11 // pred_check
          %p174 = pneg %p99
        $region18: #{tpu_custom_call.1} parent=11 // pred_check_branch
          %176 = sbr.rel (%p174) target = $region20
        $region19: #{tpu_custom_call.1} parent=11 // pred_region
          _
        $region20: #{tpu_custom_call.1} parent=11 // pred_fallthru
          _
        // Predicated region
        $region21: #{tpu_custom_call.1} parent=11 // pred_check
          %p177 = pneg %p120
        $region22: #{tpu_custom_call.1} parent=11 // pred_check_branch
          %179 = sbr.rel (%p177) target = $region24
        $region23: #{tpu_custom_call.1} parent=11 // pred_region
          _
        $region24: #{tpu_custom_call.1} parent=11 // pred_fallthru
          _
      $region12: #{tpu_custom_call.1} parent=5 // pred_fallthru
        _
      %p180 = scmp.lt.s32.totalorder %s17, 2
      // Predicated region
      $region25: #{tpu_custom_call.1} parent=5 // pred_check
        %p181 = pneg %p180
      $region26: #{tpu_custom_call.1} parent=5 // pred_check_branch
        %183 = sbr.rel (%p181) target = $region28
      $region27: #{tpu_custom_call.1} parent=5 // pred_region
        // Predicated region
        $region29: #{tpu_custom_call.1} parent=27 // pred_check
          %p184 = pneg %p51
        $region30: #{tpu_custom_call.1} parent=27 // pred_check_branch
          %186 = sbr.rel (%p184) target = $region32
        $region31: #{tpu_custom_call.1} parent=27 // pred_region
          %s187 = sand.u32 %s41, 1
          %s188 = scalar_lea.sflag [#allocation4], %s187
          %s189 = sand.u32 %s41, 1
          %s190 = smul.addr %s189, 64
          %s191 = scalar_lea.vmem [#allocation3], %s190
          %s193 = ssub.s32 1024, 1024
          %194 = vsyncadd %s188, %s193
          %s195 = smul.addr %s24, 8
          %s196 = sadd.s32 %s25, %s195
          %s197 = smul.addr %s196, 128
          %s198 = scalar_lea.hbm %s0, %s197
          %s199 = sshll.u32 %s191, 4
          %s200 = int_to_ptr.vmem [resolvable:$true] %s199
          %205 = dma.hbm_to_vmem [thread:$0]  %s198, 1024, %s200, %s188, 128, 128, 8
        $region32: #{tpu_custom_call.1} parent=27 // pred_fallthru
          _
      $region28: #{tpu_custom_call.1} parent=5 // pred_fallthru
        _
      %p206 = scmp.le.s32.totalorder 1, %s17
      %p207 = scmp.lt.s32.totalorder %s17, 3
      %p208 = pnand %p206, %p207
      %p209 = pneg %p208
      // Predicated region
      $region33: #{tpu_custom_call.1} parent=5 // pred_check
        _
      $region34: #{tpu_custom_call.1} parent=5 // pred_check_branch
        %211 = sbr.rel (%p208) target = $region36
      $region35: #{tpu_custom_call.1} parent=5 // pred_region
        %s212 = ssub.s32 %s17, 1
        %s213 = sand.u32 %s44, 1
        %s214 = scalar_lea.sflag [#allocation4], %s213
        %s215 = sand.u32 %s44, 1
        %s216 = smul.addr %s215, 64
        %s217 = scalar_lea.vmem [#allocation3], %s216
        // Predicated region
        $region37: #{tpu_custom_call.1} parent=35 // pred_check
          %p218 = pneg %p57
        $region38: #{tpu_custom_call.1} parent=35 // pred_check_branch
          %220 = sbr.rel (%p218) target = $region40
        $region39: #{tpu_custom_call.1} parent=35 // pred_region
          %221 = dma.done %s214, 1024
        $region40: #{tpu_custom_call.1} parent=35 // pred_fallthru
          _
        // Predicated region
        $region41: #{tpu_custom_call.1} parent=35 // pred_check
          %p222 = pneg %p78
        $region42: #{tpu_custom_call.1} parent=35 // pred_check_branch
          %224 = sbr.rel (%p222) target = $region44
        $region43: #{tpu_custom_call.1} parent=35 // pred_region
          %225 = dma.done [#allocation7], 256
        $region44: #{tpu_custom_call.1} parent=35 // pred_fallthru
          _
        %s226 = sand.u32 %s44, 1
        %s227 = scalar_lea.sflag [#allocation4], %s226
        %s228 = sand.u32 %s44, 1
        %s229 = smul.addr %s228, 64
        %s230 = scalar_lea.vmem [#allocation3], %s229
        %p231 = pneg %p57
        %p232 = pneg %p54
        %p233 = pneg %p78
        %p234 = pneg %p75
        %p235 = pneg %p99
        %p236 = pneg %p96
        %p237 = pneg %p120
        %p238 = pneg %p117
        %p239 = pneg %p146
        %p240 = pneg %p143
        %s241 = sand.u32 %s133, 1
        %s242 = scalar_lea.sflag [#allocation5], %s241
        %s243 = sand.u32 %s133, 1
        %s244 = smul.addr %s243, 16
        %s245 = scalar_lea.vmem [#allocation8], %s244
        %v246 = vld [vmem:[#allocation6] sm:$0xff]
        %v247 = vld [vmem:[#allocation6 + $0x8] sm:$0xff]
        %v248 = vld [vmem:[%s2] sm:$0xff]
        %v249 = vld [vmem:[%s3] sm:$0xff]
        %v250 = vld [vmem:[%s217] sm:$0xff]
        %v251 = vld [vmem:[%s217 + $0x8] sm:$0xff]
        %s252 = scalar_lea.vmem %s217, 16 [#allocation3]
        %v253 = vld [vmem:[%s252] sm:$0xff]
        %v254 = vld [vmem:[%s252 + $0x8] sm:$0xff]
        %s255 = scalar_lea.vmem %s217, 32 [#allocation3]
        %v256 = vld [vmem:[%s255] sm:$0xff]
        %v257 = vld [vmem:[%s255 + $0x8] sm:$0xff]
        %s258 = scalar_lea.vmem %s217, 48 [#allocation3]
        %v259 = vld [vmem:[%s258] sm:$0xff]
        %v260 = vld [vmem:[%s258 + $0x8] sm:$0xff]
        %vm261 = vcmask 130048
        %262 = vst.msk [vmem:[#allocation2] sm:$0xff] %vm261, %v250
        %263 = vst.msk [vmem:[#allocation2 + $0x8] sm:$0xff] %vm261, %v251
        %s264 = scalar_lea.vmem [#allocation2], 16
        %265 = vst.msk [vmem:[%s264] sm:$0xff] %vm261, %v253
        %266 = vst.msk [vmem:[%s264 + $0x8] sm:$0xff] %vm261, %v254
        %s267 = scalar_lea.vmem [#allocation2], 32
        %268 = vst.msk [vmem:[%s267] sm:$0xff] %vm261, %v256
        %269 = vst.msk [vmem:[%s267 + $0x8] sm:$0xff] %vm261, %v257
        %s270 = scalar_lea.vmem [#allocation2], 48
        %271 = vst.msk [vmem:[%s270] sm:$0xff] %vm261, %v259
        %272 = vst.msk [vmem:[%s270 + $0x8] sm:$0xff] %vm261, %v260
        %275 = vrot.lane.b32.xlu0 %v253, 16
        %v276 = vpop.permute.xlu0 %275
        %277 = vrot.lane.b32.xlu0 %v254, 16
        %v278 = vpop.permute.xlu0 %277
        %283 = vrot.lane.b32.xlu0 %v256, 32
        %v284 = vpop.permute.xlu0 %283
        %285 = vrot.lane.b32.xlu0 %v257, 32
        %v286 = vpop.permute.xlu0 %285
        %291 = vrot.lane.b32.xlu0 %v259, 48
        %v292 = vpop.permute.xlu0 %291
        %293 = vrot.lane.b32.xlu0 %v260, 48
        %v294 = vpop.permute.xlu0 %293
        %v297 = vsel %vm261, %v250, %v276
        %v298 = vsel %vm261, %v251, %v278
        %vm299 = vcmask 261120
        %v300 = vsel %vm299, %v297, %v284
        %v301 = vsel %vm299, %v298, %v286
        %vm302 = vcmask 392192
        %v303 = vsel %vm302, %v300, %v292
        %v304 = vsel %vm302, %v301, %v294
        %v306 = vsel %vm261, %v246, 0
        %v309 = vsel %vm261, %v247, 0
        %311 = vmatprep.subr.mxu0 0.0
        %312 = vmatpush1.msra.mxu0 %v303
        %313 = vmatprep.subr.mxu0 0.0
        %314 = vmatpush1.msra.mxu0 %v304
        %315 = vmatprep.subr.mxu0 0.0
        %316 = vmatpush1.msra.mxu0 0.0
        %317 = vmatprep.subr.mxu0 0.0
        %318 = vmatpush1.msra.mxu0 0.0
        %319 = vmatprep.subr.mxu0 0.0
        %320 = vmatpush1.msra.mxu0 0.0
        %321 = vmatprep.subr.mxu0 0.0
        %322 = vmatpush1.msra.mxu0 0.0
        %323 = vmatprep.subr.mxu0 0.0
        %324 = vmatpush1.msra.mxu0 0.0
        %325 = vmatprep.subr.mxu0 0.0
        %326 = vmatpush1.msra.mxu0 0.0
        %327 = vmatprep.subr.mxu0 0.0
        %328 = vmatpush1.msra.mxu0 0.0
        %329 = vmatprep.subr.mxu0 0.0
        %330 = vmatpush1.msra.mxu0 0.0
        %331 = vmatprep.subr.mxu0 0.0
        %332 = vmatpush1.msra.mxu0 0.0
        %333 = vmatprep.subr.mxu0 0.0
        %334 = vmatpush1.msra.mxu0 0.0
        %335 = vmatprep.subr.mxu0 0.0
        %336 = vmatpush1.msra.mxu0 0.0
        %337 = vmatprep.subr.mxu0 0.0
        %338 = vmatpush1.msra.mxu0 0.0
        %339 = vmatprep.subr.mxu0 0.0
        %340 = vmatpush1.msra.mxu0 0.0
        %341 = vmatprep.subr.mxu0 0.0
        %342 = vmatpush1.msra.mxu0 0.0
        %343 = vmatprep.subr.mxu0 0.0
        %344 = vmatpush1.msra.mxu0 0.0
        %345 = vmatprep.subr.mxu0 0.0
        %346 = vmatpush1.msra.mxu0 0.0
        %347 = vmatprep.subr.mxu0 0.0
        %348 = vmatpush1.msra.mxu0 0.0
        %349 = vmatprep.subr.mxu0 0.0
        %350 = vmatpush1.msra.mxu0 0.0
        %351 = vmatprep.subr.mxu0 0.0
        %352 = vmatpush1.msra.mxu0 0.0
        %353 = vmatprep.subr.mxu0 0.0
        %354 = vmatpush1.msra.mxu0 0.0
        %355 = vmatprep.subr.mxu0 0.0
        %356 = vmatpush1.msra.mxu0 0.0
        %357 = vmatprep.subr.mxu0 0.0
        %358 = vmatpush1.msra.mxu0 0.0
        %359 = vmatprep.subr.mxu0 0.0
        %360 = vmatpush1.msra.mxu0 0.0
        %361 = vmatprep.subr.mxu0 0.0
        %362 = vmatpush1.msra.mxu0 0.0
        %363 = vmatprep.subr.mxu0 0.0
        %364 = vmatpush1.msra.mxu0 0.0
        %365 = vmatprep.subr.mxu0 0.0
        %366 = vmatpush1.msra.mxu0 0.0
        %367 = vmatprep.subr.mxu0 0.0
        %368 = vmatpush1.msra.mxu0 0.0
        %369 = vmatprep.subr.mxu0 0.0
        %370 = vmatpush1.msra.mxu0 0.0
        %371 = vmatprep.subr.mxu0 0.0
        %372 = vmatpush1.msra.mxu0 0.0
        %373 = vmatprep.subr.mxu0 0.0
        %374 = vmatpush1.msra.mxu0 0.0
        %375 = vmatprep.mubr.f32.mxu0 0.0
        %376 = vmatmul.mubr.f32.gmra.mrb[0].mxu0 %v306
        %v377 = vpop.f32.mrb[0].mxu0
        %v378 = vadd.f32 0.0, %v377
        %v379 = vpop.f32.mrb[0].mxu0
        %380 = vmatprep.mubr.f32.mxu0 0.0
        %381 = vmatmul.mubr.f32.gmra.mrb[0].mxu0 %v309
        %v382 = vpop.f32.mrb[0].mxu0
        %v383 = vadd.f32 0.0, %v382
        %v384 = vpop.f32.mrb[0].mxu0
        %385 = vdwg.mxu0
        %s386 = scalar_lea.vmem [#allocation2], 64
        %387 = vst.msk [vmem:[%s386] sm:$0xff] %vm261, %v378
        %388 = vst.msk [vmem:[%s386 + $0x8] sm:$0xff] %vm261, %v383
        %391 = vrot.lane.b32.xlu0 %v378, 112
        %v392 = vpop.permute.xlu0 %391
        %393 = vrot.lane.b32.xlu0 %v383, 112
        %v394 = vpop.permute.xlu0 %393
        %s397 = scalar_lea.vmem [#allocation2], 80
        %398 = vst.msk [vmem:[%s397] sm:$0xff] %vm261, %v392
        %399 = vst.msk [vmem:[%s397 + $0x8] sm:$0xff] %vm261, %v394
        %400 = vrot.lane.b32.xlu0 %v378, 96
        %v401 = vpop.permute.xlu0 %400
        %402 = vrot.lane.b32.xlu0 %v383, 96
        %v403 = vpop.permute.xlu0 %402
        %s406 = scalar_lea.vmem [#allocation2], 96
        %407 = vst.msk [vmem:[%s406] sm:$0xff] %vm261, %v401
        %408 = vst.msk [vmem:[%s406 + $0x8] sm:$0xff] %vm261, %v403
        %409 = vrot.lane.b32.xlu0 %v378, 80
        %v410 = vpop.permute.xlu0 %409
        %411 = vrot.lane.b32.xlu0 %v383, 80
        %v412 = vpop.permute.xlu0 %411
        %s415 = scalar_lea.vmem [#allocation2], 112
        %416 = vst.msk [vmem:[%s415] sm:$0xff] %vm261, %v410
        %417 = vst.msk [vmem:[%s415 + $0x8] sm:$0xff] %vm261, %v412
        %418 = vmatprep.subr.mxu0 0.0
        %419 = vmatpush1.msra.mxu0 %v378
        %420 = vmatprep.subr.mxu0 0.0
        %421 = vmatpush1.msra.mxu0 %v383
        %422 = vmatprep.subr.mxu0 0.0
        %423 = vmatpush1.msra.mxu0 0.0
        %424 = vmatprep.subr.mxu0 0.0
        %425 = vmatpush1.msra.mxu0 0.0
        %426 = vmatprep.subr.mxu0 0.0
        %427 = vmatpush1.msra.mxu0 0.0
        %428 = vmatprep.subr.mxu0 0.0
        %429 = vmatpush1.msra.mxu0 0.0
        %430 = vmatprep.subr.mxu0 0.0
        %431 = vmatpush1.msra.mxu0 0.0
        %432 = vmatprep.subr.mxu0 0.0
        %433 = vmatpush1.msra.mxu0 0.0
        %434 = vmatprep.subr.mxu0 0.0
        %435 = vmatpush1.msra.mxu0 0.0
        %436 = vmatprep.subr.mxu0 0.0
        %437 = vmatpush1.msra.mxu0 0.0
        %438 = vmatprep.subr.mxu0 0.0
        %439 = vmatpush1.msra.mxu0 0.0
        %440 = vmatprep.subr.mxu0 0.0
        %441 = vmatpush1.msra.mxu0 0.0
        %442 = vmatprep.subr.mxu0 0.0
        %443 = vmatpush1.msra.mxu0 0.0
        %444 = vmatprep.subr.mxu0 0.0
        %445 = vmatpush1.msra.mxu0 0.0
        %446 = vmatprep.subr.mxu0 0.0
        %447 = vmatpush1.msra.mxu0 0.0
        %448 = vmatprep.subr.mxu0 0.0
        %449 = vmatpush1.msra.mxu0 0.0
        %450 = vmatprep.subr.mxu0 0.0
        %451 = vmatpush1.msra.mxu0 0.0
        %452 = vmatprep.subr.mxu0 0.0
        %453 = vmatpush1.msra.mxu0 0.0
        %454 = vmatprep.subr.mxu0 0.0
        %455 = vmatpush1.msra.mxu0 0.0
        %456 = vmatprep.subr.mxu0 0.0
        %457 = vmatpush1.msra.mxu0 0.0
        %458 = vmatprep.subr.mxu0 0.0
        %459 = vmatpush1.msra.mxu0 0.0
        %460 = vmatprep.subr.mxu0 0.0
        %461 = vmatpush1.msra.mxu0 0.0
        %462 = vmatprep.subr.mxu0 0.0
        %463 = vmatpush1.msra.mxu0 0.0
        %464 = vmatprep.subr.mxu0 0.0
        %465 = vmatpush1.msra.mxu0 0.0
        %466 = vmatprep.subr.mxu0 0.0
        %467 = vmatpush1.msra.mxu0 0.0
        %468 = vmatprep.subr.mxu0 0.0
        %469 = vmatpush1.msra.mxu0 0.0
        %470 = vmatprep.subr.mxu0 0.0
        %471 = vmatpush1.msra.mxu0 0.0
        %472 = vmatprep.subr.mxu0 0.0
        %473 = vmatpush1.msra.mxu0 0.0
        %474 = vmatprep.subr.mxu0 0.0
        %475 = vmatpush1.msra.mxu0 0.0
        %476 = vmatprep.subr.mxu0 0.0
        %477 = vmatpush1.msra.mxu0 0.0
        %478 = vmatprep.subr.mxu0 0.0
        %479 = vmatpush1.msra.mxu0 0.0
        %480 = vmatprep.subr.mxu0 0.0
        %481 = vmatpush1.msra.mxu0 0.0
        %482 = vmatprep.mubr.f32.mxu0 0.0
        %483 = vmatmul.mubr.f32.gmra.mrb[0].mxu0 %v306
        %v484 = vpop.f32.mrb[0].mxu0
        %v485 = vadd.f32 0.0, %v484
        %v486 = vpop.f32.mrb[0].mxu0
        %487 = vmatprep.mubr.f32.mxu0 0.0
        %488 = vmatmul.mubr.f32.gmra.mrb[0].mxu0 %v309
        %v489 = vpop.f32.mrb[0].mxu0
        %v490 = vadd.f32 0.0, %v489
        %v491 = vpop.f32.mrb[0].mxu0
        %492 = vdwg.mxu0
        %s493 = scalar_lea.vmem [#allocation2], 128
        %494 = vst.msk [vmem:[%s493] sm:$0xff] %vm261, %v485
        %495 = vst.msk [vmem:[%s493 + $0x8] sm:$0xff] %vm261, %v490
        %498 = vrot.lane.b32.xlu0 %v485, 112
        %v499 = vpop.permute.xlu0 %498
        %500 = vrot.lane.b32.xlu0 %v490, 112
        %v501 = vpop.permute.xlu0 %500
        %s504 = scalar_lea.vmem [#allocation2], 144
        %505 = vst.msk [vmem:[%s504] sm:$0xff] %vm261, %v499
        %506 = vst.msk [vmem:[%s504 + $0x8] sm:$0xff] %vm261, %v501
        %507 = vrot.lane.b32.xlu0 %v485, 96
        %v508 = vpop.permute.xlu0 %507
        %509 = vrot.lane.b32.xlu0 %v490, 96
        %v510 = vpop.permute.xlu0 %509
        %s513 = scalar_lea.vmem [#allocation2], 160
        %514 = vst.msk [vmem:[%s513] sm:$0xff] %vm261, %v508
        %515 = vst.msk [vmem:[%s513 + $0x8] sm:$0xff] %vm261, %v510
        %516 = vrot.lane.b32.xlu0 %v485, 80
        %v517 = vpop.permute.xlu0 %516
        %518 = vrot.lane.b32.xlu0 %v490, 80
        %v519 = vpop.permute.xlu0 %518
        %s522 = scalar_lea.vmem [#allocation2], 176
        %523 = vst.msk [vmem:[%s522] sm:$0xff] %vm261, %v517
        %524 = vst.msk [vmem:[%s522 + $0x8] sm:$0xff] %vm261, %v519
        %v525 = vld [vmem:[#allocation2] sm:$0xff]
        %v526 = vld [vmem:[#allocation2 + $0x8] sm:$0xff]
        %v527 = vld [vmem:[#allocation2 + $0x10] sm:$0xff]
        %v528 = vld [vmem:[#allocation2 + $0x18] sm:$0xff]
        %v529 = vld [vmem:[#allocation2 + $0x20] sm:$0xff]
        %v530 = vld [vmem:[#allocation2 + $0x28] sm:$0xff]
        %v531 = vld [vmem:[#allocation2 + $0x30] sm:$0xff]
        %v532 = vld [vmem:[#allocation2 + $0x38] sm:$0xff]
        %v533 = vld [vmem:[#allocation2 + $0x40] sm:$0xff]
        %v534 = vld [vmem:[#allocation2 + $0x48] sm:$0xff]
        %v535 = vld [vmem:[#allocation2 + $0x50] sm:$0xff]
        %v536 = vld [vmem:[#allocation2 + $0x58] sm:$0xff]
        %v537 = vld [vmem:[#allocation2 + $0x60] sm:$0xff]
        %v538 = vld [vmem:[#allocation2 + $0x68] sm:$0xff]
        %v539 = vld [vmem:[#allocation2 + $0x70] sm:$0xff]
        %v540 = vld [vmem:[#allocation2 + $0x78] sm:$0xff]
        %v541 = vld [vmem:[#allocation2 + $0x80] sm:$0xff]
        %v542 = vld [vmem:[#allocation2 + $0x88] sm:$0xff]
        %v543 = vld [vmem:[#allocation2 + $0x90] sm:$0xff]
        %v544 = vld [vmem:[#allocation2 + $0x98] sm:$0xff]
        %v545 = vld [vmem:[#allocation2 + $0xa0] sm:$0xff]
        %v546 = vld [vmem:[#allocation2 + $0xa8] sm:$0xff]
        %v547 = vld [vmem:[#allocation2 + $0xb0] sm:$0xff]
        %v548 = vld [vmem:[#allocation2 + $0xb8] sm:$0xff]
        %v561 = vrot.slane %v527, 7
        %vm562 = vcmask 1041409
        %v563 = vsel %vm562, %v561, %v525
        %v564 = vrot.slane %v529, 6
        %vm565 = vcmask 1042434
        %v566 = vsel %vm565, %v564, %v563
        %v567 = vrot.slane %v531, 5
        %vm568 = vcmask 1043459
        %v569 = vsel %vm568, %v567, %v566
        %v570 = vrot.slane %v533, 4
        %vm571 = vcmask 1044484
        %v572 = vsel %vm571, %v570, %v569
        %v573 = vrot.slane %v535, 3
        %vm574 = vcmask 1045509
        %v575 = vsel %vm574, %v573, %v572
        %v576 = vrot.slane %v537, 2
        %vm577 = vcmask 1046534
        %v578 = vsel %vm577, %v576, %v575
        %v579 = vrot.slane %v539, 1
        %vm580 = vcmask 1047559
        %v581 = vsel %vm580, %v579, %v578
        %v582 = vrot.slane %v543, 7
        %v583 = vsel %vm562, %v582, %v541
        %v584 = vrot.slane %v545, 6
        %v585 = vsel %vm565, %v584, %v583
        %v586 = vrot.slane %v547, 5
        %v587 = vsel %vm568, %v586, %v585
        %v590 = vrot.slane %v525, 1
        %v591 = vsel %vm562, %v527, %v590
        %v592 = vrot.slane %v529, 7
        %v593 = vsel %vm565, %v592, %v591
        %v594 = vrot.slane %v531, 6
        %v595 = vsel %vm568, %v594, %v593
        %v596 = vrot.slane %v533, 5
        %v597 = vsel %vm571, %v596, %v595
        %v598 = vrot.slane %v535, 4
        %v599 = vsel %vm574, %v598, %v597
        %v600 = vrot.slane %v537, 3
        %v601 = vsel %vm577, %v600, %v599
        %v602 = vrot.slane %v539, 2
        %v603 = vsel %vm580, %v602, %v601
        %v604 = vrot.slane %v541, 1
        %v605 = vsel %vm562, %v543, %v604
        %v606 = vrot.slane %v545, 7
        %v607 = vsel %vm565, %v606, %v605
        %v608 = vrot.slane %v547, 6
        %v609 = vsel %vm568, %v608, %v607
        %610 = vrot.lane.b32.xlu0 %v603, 16
        %v611 = vpop.permute.xlu0 %610
        %612 = vrot.lane.b32.xlu0 %v609, 16
        %v613 = vpop.permute.xlu0 %612
        %v616 = vrot.slane %v525, 2
        %v617 = vrot.slane %v527, 1
        %v618 = vsel %vm562, %v617, %v616
        %v619 = vsel %vm565, %v529, %v618
        %v620 = vrot.slane %v531, 7
        %v621 = vsel %vm568, %v620, %v619
        %v622 = vrot.slane %v533, 6
        %v623 = vsel %vm571, %v622, %v621
        %v624 = vrot.slane %v535, 5
        %v625 = vsel %vm574, %v624, %v623
        %v626 = vrot.slane %v537, 4
        %v627 = vsel %vm577, %v626, %v625
        %v628 = vrot.slane %v539, 3
        %v629 = vsel %vm580, %v628, %v627
        %v630 = vrot.slane %v541, 2
        %v631 = vrot.slane %v543, 1
        %v632 = vsel %vm562, %v631, %v630
        %v633 = vsel %vm565, %v545, %v632
        %v634 = vrot.slane %v547, 7
        %v635 = vsel %vm568, %v634, %v633
        %636 = vrot.lane.b32.xlu0 %v629, 32
        %v637 = vpop.permute.xlu0 %636
        %638 = vrot.lane.b32.xlu0 %v635, 32
        %v639 = vpop.permute.xlu0 %638
        %v642 = vrot.slane %v525, 3
        %v643 = vrot.slane %v527, 2
        %v644 = vsel %vm562, %v643, %v642
        %v645 = vrot.slane %v529, 1
        %v646 = vsel %vm565, %v645, %v644
        %v647 = vsel %vm568, %v531, %v646
        %v648 = vrot.slane %v533, 7
        %v649 = vsel %vm571, %v648, %v647
        %v650 = vrot.slane %v535, 6
        %v651 = vsel %vm574, %v650, %v649
        %v652 = vrot.slane %v537, 5
        %v653 = vsel %vm577, %v652, %v651
        %v654 = vrot.slane %v539, 4
        %v655 = vsel %vm580, %v654, %v653
        %v656 = vrot.slane %v541, 3
        %v657 = vrot.slane %v543, 2
        %v658 = vsel %vm562, %v657, %v656
        %v659 = vrot.slane %v545, 1
        %v660 = vsel %vm565, %v659, %v658
        %v661 = vsel %vm568, %v547, %v660
        %662 = vrot.lane.b32.xlu0 %v655, 48
        %v663 = vpop.permute.xlu0 %662
        %664 = vrot.lane.b32.xlu0 %v661, 48
        %v665 = vpop.permute.xlu0 %664
        %v668 = vrot.slane %v525, 4
        %v669 = vrot.slane %v527, 3
        %v670 = vsel %vm562, %v669, %v668
        %v671 = vrot.slane %v529, 2
        %v672 = vsel %vm565, %v671, %v670
        %v673 = vrot.slane %v531, 1
        %v674 = vsel %vm568, %v673, %v672
        %v675 = vsel %vm571, %v533, %v674
        %v676 = vrot.slane %v535, 7
        %v677 = vsel %vm574, %v676, %v675
        %v678 = vrot.slane %v537, 6
        %v679 = vsel %vm577, %v678, %v677
        %v680 = vrot.slane %v539, 5
        %v681 = vsel %vm580, %v680, %v679
        %v682 = vrot.slane %v541, 4
        %v683 = vrot.slane %v543, 3
        %v684 = vsel %vm562, %v683, %v682
        %v685 = vrot.slane %v545, 2
        %v686 = vsel %vm565, %v685, %v684
        %v687 = vrot.slane %v547, 1
        %v688 = vsel %vm568, %v687, %v686
        %689 = vrot.lane.b32.xlu0 %v681, 64
        %v690 = vpop.permute.xlu0 %689
        %691 = vrot.lane.b32.xlu0 %v688, 64
        %v692 = vpop.permute.xlu0 %691
        %v695 = vrot.slane %v525, 5
        %v696 = vrot.slane %v527, 4
        %v697 = vsel %vm562, %v696, %v695
        %v698 = vrot.slane %v529, 3
        %v699 = vsel %vm565, %v698, %v697
        %v700 = vrot.slane %v531, 2
        %v701 = vsel %vm568, %v700, %v699
        %v702 = vrot.slane %v533, 1
        %v703 = vsel %vm571, %v702, %v701
        %v704 = vsel %vm574, %v535, %v703
        %v705 = vrot.slane %v537, 7
        %v706 = vsel %vm577, %v705, %v704
        %v707 = vrot.slane %v539, 6
        %v708 = vsel %vm580, %v707, %v706
        %v709 = vrot.slane %v541, 5
        %v710 = vrot.slane %v543, 4
        %v711 = vsel %vm562, %v710, %v709
        %v712 = vrot.slane %v545, 3
        %v713 = vsel %vm565, %v712, %v711
        %v714 = vrot.slane %v547, 2
        %v715 = vsel %vm568, %v714, %v713
        %716 = vrot.lane.b32.xlu0 %v708, 80
        %v717 = vpop.permute.xlu0 %716
        %718 = vrot.lane.b32.xlu0 %v715, 80
        %v719 = vpop.permute.xlu0 %718
        %v722 = vrot.slane %v525, 6
        %v723 = vrot.slane %v527, 5
        %v724 = vsel %vm562, %v723, %v722
        %v725 = vrot.slane %v529, 4
        %v726 = vsel %vm565, %v725, %v724
        %v727 = vrot.slane %v531, 3
        %v728 = vsel %vm568, %v727, %v726
        %v729 = vrot.slane %v533, 2
        %v730 = vsel %vm571, %v729, %v728
        %v731 = vrot.slane %v535, 1
        %v732 = vsel %vm574, %v731, %v730
        %v733 = vsel %vm577, %v537, %v732
        %v734 = vrot.slane %v539, 7
        %v735 = vsel %vm580, %v734, %v733
        %v736 = vrot.slane %v541, 6
        %v737 = vrot.slane %v543, 5
        %v738 = vsel %vm562, %v737, %v736
        %v739 = vrot.slane %v545, 4
        %v740 = vsel %vm565, %v739, %v738
        %v741 = vrot.slane %v547, 3
        %v742 = vsel %vm568, %v741, %v740
        %743 = vrot.lane.b32.xlu0 %v735, 96
        %v744 = vpop.permute.xlu0 %743
        %745 = vrot.lane.b32.xlu0 %v742, 96
        %v746 = vpop.permute.xlu0 %745
        %v749 = vrot.slane %v525, 7
        %v750 = vrot.slane %v527, 6
        %v751 = vsel %vm562, %v750, %v749
        %v752 = vrot.slane %v529, 5
        %v753 = vsel %vm565, %v752, %v751
        %v754 = vrot.slane %v531, 4
        %v755 = vsel %vm568, %v754, %v753
        %v756 = vrot.slane %v533, 3
        %v757 = vsel %vm571, %v756, %v755
        %v758 = vrot.slane %v535, 2
        %v759 = vsel %vm574, %v758, %v757
        %v760 = vrot.slane %v537, 1
        %v761 = vsel %vm577, %v760, %v759
        %v762 = vsel %vm580, %v539, %v761
        %v763 = vrot.slane %v541, 7
        %v764 = vrot.slane %v543, 6
        %v765 = vsel %vm562, %v764, %v763
        %v766 = vrot.slane %v545, 5
        %v767 = vsel %vm565, %v766, %v765
        %v768 = vrot.slane %v547, 4
        %v769 = vsel %vm568, %v768, %v767
        %770 = vrot.lane.b32.xlu0 %v762, 112
        %v771 = vpop.permute.xlu0 %770
        %772 = vrot.lane.b32.xlu0 %v769, 112
        %v773 = vpop.permute.xlu0 %772
        %v788 = vrot.slane %v528, 7
        %v789 = vsel %vm562, %v788, %v526
        %v790 = vrot.slane %v530, 6
        %v791 = vsel %vm565, %v790, %v789
        %v792 = vrot.slane %v532, 5
        %v793 = vsel %vm568, %v792, %v791
        %v794 = vrot.slane %v534, 4
        %v795 = vsel %vm571, %v794, %v793
        %v796 = vrot.slane %v536, 3
        %v797 = vsel %vm574, %v796, %v795
        %v798 = vrot.slane %v538, 2
        %v799 = vsel %vm577, %v798, %v797
        %v800 = vrot.slane %v540, 1
        %v801 = vsel %vm580, %v800, %v799
        %v802 = vrot.slane %v544, 7
        %v803 = vsel %vm562, %v802, %v542
        %v804 = vrot.slane %v546, 6
        %v805 = vsel %vm565, %v804, %v803
        %v806 = vrot.slane %v548, 5
        %v807 = vsel %vm568, %v806, %v805
        %v810 = vrot.slane %v526, 1
        %v811 = vsel %vm562, %v528, %v810
        %v812 = vrot.slane %v530, 7
        %v813 = vsel %vm565, %v812, %v811
        %v814 = vrot.slane %v532, 6
        %v815 = vsel %vm568, %v814, %v813
        %v816 = vrot.slane %v534, 5
        %v817 = vsel %vm571, %v816, %v815
        %v818 = vrot.slane %v536, 4
        %v819 = vsel %vm574, %v818, %v817
        %v820 = vrot.slane %v538, 3
        %v821 = vsel %vm577, %v820, %v819
        %v822 = vrot.slane %v540, 2
        %v823 = vsel %vm580, %v822, %v821
        %v824 = vrot.slane %v542, 1
        %v825 = vsel %vm562, %v544, %v824
        %v826 = vrot.slane %v546, 7
        %v827 = vsel %vm565, %v826, %v825
        %v828 = vrot.slane %v548, 6
        %v829 = vsel %vm568, %v828, %v827
        %830 = vrot.lane.b32.xlu0 %v823, 16
        %v831 = vpop.permute.xlu0 %830
        %832 = vrot.lane.b32.xlu0 %v829, 16
        %v833 = vpop.permute.xlu0 %832
        %v836 = vrot.slane %v526, 2
        %v837 = vrot.slane %v528, 1
        %v838 = vsel %vm562, %v837, %v836
        %v839 = vsel %vm565, %v530, %v838
        %v840 = vrot.slane %v532, 7
        %v841 = vsel %vm568, %v840, %v839
        %v842 = vrot.slane %v534, 6
        %v843 = vsel %vm571, %v842, %v841
        %v844 = vrot.slane %v536, 5
        %v845 = vsel %vm574, %v844, %v843
        %v846 = vrot.slane %v538, 4
        %v847 = vsel %vm577, %v846, %v845
        %v848 = vrot.slane %v540, 3
        %v849 = vsel %vm580, %v848, %v847
        %v850 = vrot.slane %v542, 2
        %v851 = vrot.slane %v544, 1
        %v852 = vsel %vm562, %v851, %v850
        %v853 = vsel %vm565, %v546, %v852
        %v854 = vrot.slane %v548, 7
        %v855 = vsel %vm568, %v854, %v853
        %856 = vrot.lane.b32.xlu0 %v849, 32
        %v857 = vpop.permute.xlu0 %856
        %858 = vrot.lane.b32.xlu0 %v855, 32
        %v859 = vpop.permute.xlu0 %858
        %v862 = vrot.slane %v526, 3
        %v863 = vrot.slane %v528, 2
        %v864 = vsel %vm562, %v863, %v862
        %v865 = vrot.slane %v530, 1
        %v866 = vsel %vm565, %v865, %v864
        %v867 = vsel %vm568, %v532, %v866
        %v868 = vrot.slane %v534, 7
        %v869 = vsel %vm571, %v868, %v867
        %v870 = vrot.slane %v536, 6
        %v871 = vsel %vm574, %v870, %v869
        %v872 = vrot.slane %v538, 5
        %v873 = vsel %vm577, %v872, %v871
        %v874 = vrot.slane %v540, 4
        %v875 = vsel %vm580, %v874, %v873
        %v876 = vrot.slane %v542, 3
        %v877 = vrot.slane %v544, 2
        %v878 = vsel %vm562, %v877, %v876
        %v879 = vrot.slane %v546, 1
        %v880 = vsel %vm565, %v879, %v878
        %v881 = vsel %vm568, %v548, %v880
        %882 = vrot.lane.b32.xlu0 %v875, 48
        %v883 = vpop.permute.xlu0 %882
        %884 = vrot.lane.b32.xlu0 %v881, 48
        %v885 = vpop.permute.xlu0 %884
        %v888 = vrot.slane %v526, 4
        %v889 = vrot.slane %v528, 3
        %v890 = vsel %vm562, %v889, %v888
        %v891 = vrot.slane %v530, 2
        %v892 = vsel %vm565, %v891, %v890
        %v893 = vrot.slane %v532, 1
        %v894 = vsel %vm568, %v893, %v892
        %v895 = vsel %vm571, %v534, %v894
        %v896 = vrot.slane %v536, 7
        %v897 = vsel %vm574, %v896, %v895
        %v898 = vrot.slane %v538, 6
        %v899 = vsel %vm577, %v898, %v897
        %v900 = vrot.slane %v540, 5
        %v901 = vsel %vm580, %v900, %v899
        %v902 = vrot.slane %v542, 4
        %v903 = vrot.slane %v544, 3
        %v904 = vsel %vm562, %v903, %v902
        %v905 = vrot.slane %v546, 2
        %v906 = vsel %vm565, %v905, %v904
        %v907 = vrot.slane %v548, 1
        %v908 = vsel %vm568, %v907, %v906
        %909 = vrot.lane.b32.xlu0 %v901, 64
        %v910 = vpop.permute.xlu0 %909
        %911 = vrot.lane.b32.xlu0 %v908, 64
        %v912 = vpop.permute.xlu0 %911
        %v915 = vrot.slane %v526, 5
        %v916 = vrot.slane %v528, 4
        %v917 = vsel %vm562, %v916, %v915
        %v918 = vrot.slane %v530, 3
        %v919 = vsel %vm565, %v918, %v917
        %v920 = vrot.slane %v532, 2
        %v921 = vsel %vm568, %v920, %v919
        %v922 = vrot.slane %v534, 1
        %v923 = vsel %vm571, %v922, %v921
        %v924 = vsel %vm574, %v536, %v923
        %v925 = vrot.slane %v538, 7
        %v926 = vsel %vm577, %v925, %v924
        %v927 = vrot.slane %v540, 6
        %v928 = vsel %vm580, %v927, %v926
        %v929 = vrot.slane %v542, 5
        %v930 = vrot.slane %v544, 4
        %v931 = vsel %vm562, %v930, %v929
        %v932 = vrot.slane %v546, 3
        %v933 = vsel %vm565, %v932, %v931
        %v934 = vrot.slane %v548, 2
        %v935 = vsel %vm568, %v934, %v933
        %936 = vrot.lane.b32.xlu0 %v928, 80
        %v937 = vpop.permute.xlu0 %936
        %938 = vrot.lane.b32.xlu0 %v935, 80
        %v939 = vpop.permute.xlu0 %938
        %v942 = vrot.slane %v526, 6
        %v943 = vrot.slane %v528, 5
        %v944 = vsel %vm562, %v943, %v942
        %v945 = vrot.slane %v530, 4
        %v946 = vsel %vm565, %v945, %v944
        %v947 = vrot.slane %v532, 3
        %v948 = vsel %vm568, %v947, %v946
        %v949 = vrot.slane %v534, 2
        %v950 = vsel %vm571, %v949, %v948
        %v951 = vrot.slane %v536, 1
        %v952 = vsel %vm574, %v951, %v950
        %v953 = vsel %vm577, %v538, %v952
        %v954 = vrot.slane %v540, 7
        %v955 = vsel %vm580, %v954, %v953
        %v956 = vrot.slane %v542, 6
        %v957 = vrot.slane %v544, 5
        %v958 = vsel %vm562, %v957, %v956
        %v959 = vrot.slane %v546, 4
        %v960 = vsel %vm565, %v959, %v958
        %v961 = vrot.slane %v548, 3
        %v962 = vsel %vm568, %v961, %v960
        %963 = vrot.lane.b32.xlu0 %v955, 96
        %v964 = vpop.permute.xlu0 %963
        %965 = vrot.lane.b32.xlu0 %v962, 96
        %v966 = vpop.permute.xlu0 %965
        %v969 = vrot.slane %v526, 7
        %v970 = vrot.slane %v528, 6
        %v971 = vsel %vm562, %v970, %v969
        %v972 = vrot.slane %v530, 5
        %v973 = vsel %vm565, %v972, %v971
        %v974 = vrot.slane %v532, 4
        %v975 = vsel %vm568, %v974, %v973
        %v976 = vrot.slane %v534, 3
        %v977 = vsel %vm571, %v976, %v975
        %v978 = vrot.slane %v536, 2
        %v979 = vsel %vm574, %v978, %v977
        %v980 = vrot.slane %v538, 1
        %v981 = vsel %vm577, %v980, %v979
        %v982 = vsel %vm580, %v540, %v981
        %v983 = vrot.slane %v542, 7
        %v984 = vrot.slane %v544, 6
        %v985 = vsel %vm562, %v984, %v983
        %v986 = vrot.slane %v546, 5
        %v987 = vsel %vm565, %v986, %v985
        %v988 = vrot.slane %v548, 4
        %v989 = vsel %vm568, %v988, %v987
        %990 = vrot.lane.b32.xlu0 %v982, 112
        %v991 = vpop.permute.xlu0 %990
        %992 = vrot.lane.b32.xlu0 %v989, 112
        %v993 = vpop.permute.xlu0 %992
        %v996 = vsel %vm261, %v581, %v611
        %v997 = vsel %vm261, %v587, %v613
        %v998 = vsel %vm299, %v996, %v637
        %v999 = vsel %vm299, %v997, %v639
        %v1000 = vsel %vm302, %v998, %v663
        %v1001 = vsel %vm302, %v999, %v665
        %vm1002 = vcmask 523264
        %v1003 = vsel %vm1002, %v1000, %v690
        %v1004 = vsel %vm1002, %v1001, %v692
        %vm1005 = vcmask 654336
        %v1006 = vsel %vm1005, %v1003, %v717
        %v1007 = vsel %vm1005, %v1004, %v719
        %vm1008 = vcmask 785408
        %v1009 = vsel %vm1008, %v1006, %v744
        %v1010 = vsel %vm1008, %v1007, %v746
        %vm1011 = vcmask 916480
        %v1012 = vsel %vm1011, %v1009, %v771
        %v1013 = vsel %vm1011, %v1010, %v773
        %v1014 = vsel %vm261, %v801, %v831
        %v1015 = vsel %vm261, %v807, %v833
        %v1016 = vsel %vm299, %v1014, %v857
        %v1017 = vsel %vm299, %v1015, %v859
        %v1018 = vsel %vm302, %v1016, %v883
        %v1019 = vsel %vm302, %v1017, %v885
        %v1020 = vsel %vm1002, %v1018, %v910
        %v1021 = vsel %vm1002, %v1019, %v912
        %v1022 = vsel %vm1005, %v1020, %v937
        %v1023 = vsel %vm1005, %v1021, %v939
        %v1024 = vsel %vm1008, %v1022, %v964
        %v1025 = vsel %vm1008, %v1023, %v966
        %v1026 = vsel %vm1011, %v1024, %v991
        %v1027 = vsel %vm1011, %v1025, %v993
        %1029 = vset.pattern.permute.xlu0 0
        %1030 = vperm.xlu0 %1029, %v249
        %v1031 = vpop.permute.xlu0 %1030
        %vm1033 = vcmask 97280
        %v1035 = vsel %vm1033, %v248, 0
        %vm1037 = vcmask 1043456
        %v1039 = vsel %vm1037, %v1013, 0
        %v1042 = vsel %vm1037, %v1027, 0
        %1044 = vmatprep.subr.mxu0 %v1026
        %1045 = vmatpush1.msra.mxu0 %v1012
        %1046 = vmatprep.subr.mxu0 %v1042
        %1047 = vmatpush1.msra.mxu0 %v1039
        %1048 = vmatprep.subr.mxu0 0.0
        %1049 = vmatpush1.msra.mxu0 0.0
        %1050 = vmatprep.subr.mxu0 0.0
        %1051 = vmatpush1.msra.mxu0 0.0
        %1052 = vmatprep.subr.mxu0 0.0
        %1053 = vmatpush1.msra.mxu0 0.0
        %1054 = vmatprep.subr.mxu0 0.0
        %1055 = vmatpush1.msra.mxu0 0.0
        %1056 = vmatprep.subr.mxu0 0.0
        %1057 = vmatpush1.msra.mxu0 0.0
        %1058 = vmatprep.subr.mxu0 0.0
        %1059 = vmatpush1.msra.mxu0 0.0
        %1060 = vmatprep.subr.mxu0 0.0
        %1061 = vmatpush1.msra.mxu0 0.0
        %1062 = vmatprep.subr.mxu0 0.0
        %1063 = vmatpush1.msra.mxu0 0.0
        %1064 = vmatprep.subr.mxu0 0.0
        %1065 = vmatpush1.msra.mxu0 0.0
        %1066 = vmatprep.subr.mxu0 0.0
        %1067 = vmatpush1.msra.mxu0 0.0
        %1068 = vmatprep.subr.mxu0 0.0
        %1069 = vmatpush1.msra.mxu0 0.0
        %1070 = vmatprep.subr.mxu0 0.0
        %1071 = vmatpush1.msra.mxu0 0.0
        %1072 = vmatprep.subr.mxu0 0.0
        %1073 = vmatpush1.msra.mxu0 0.0
        %1074 = vmatprep.subr.mxu0 0.0
        %1075 = vmatpush1.msra.mxu0 0.0
        %1076 = vmatprep.subr.mxu0 0.0
        %1077 = vmatpush1.msra.mxu0 0.0
        %1078 = vmatprep.subr.mxu0 0.0
        %1079 = vmatpush1.msra.mxu0 0.0
        %1080 = vmatprep.subr.mxu0 0.0
        %1081 = vmatpush1.msra.mxu0 0.0
        %1082 = vmatprep.subr.mxu0 0.0
        %1083 = vmatpush1.msra.mxu0 0.0
        %1084 = vmatprep.subr.mxu0 0.0
        %1085 = vmatpush1.msra.mxu0 0.0
        %1086 = vmatprep.subr.mxu0 0.0
        %1087 = vmatpush1.msra.mxu0 0.0
        %1088 = vmatprep.subr.mxu0 0.0
        %1089 = vmatpush1.msra.mxu0 0.0
        %1090 = vmatprep.subr.mxu0 0.0
        %1091 = vmatpush1.msra.mxu0 0.0
        %1092 = vmatprep.subr.mxu0 0.0
        %1093 = vmatpush1.msra.mxu0 0.0
        %1094 = vmatprep.subr.mxu0 0.0
        %1095 = vmatpush1.msra.mxu0 0.0
        %1096 = vmatprep.subr.mxu0 0.0
        %1097 = vmatpush1.msra.mxu0 0.0
        %1098 = vmatprep.subr.mxu0 0.0
        %1099 = vmatpush1.msra.mxu0 0.0
        %1100 = vmatprep.subr.mxu0 0.0
        %1101 = vmatpush1.msra.mxu0 0.0
        %1102 = vmatprep.subr.mxu0 0.0
        %1103 = vmatpush1.msra.mxu0 0.0
        %1104 = vmatprep.subr.mxu0 0.0
        %1105 = vmatpush1.msra.mxu0 0.0
        %1106 = vmatprep.subr.mxu0 0.0
        %1107 = vmatpush1.msra.mxu0 0.0
        %1108 = vmatprep.mubr.f32.mxu0 0.0
        %1109 = vmatmul.mubr.f32.gmra.mrb[0].mxu0 %v1035
        %v1110 = vpop.f32.mrb[0].mxu0
        %v1111 = vadd.f32 %v1031, %v1110
        %v1112 = vpop.f32.mrb[0].mxu0
        %v1113 = vadd.f32 %v1031, %v1112
        %1114 = vdwg.mxu0
        %1115 = vst [vmem:[%s245] sm:$0xff] %v1111
        %1116 = vst [vmem:[%s245 + $0x8] sm:$0xff] %v1113
        %s1117 = sand.u32 %s133, 1
        %s1118 = scalar_lea.sflag [#allocation5], %s1117
        %s1119 = sand.u32 %s133, 1
        %s1120 = smul.addr %s1119, 16
        %s1121 = scalar_lea.vmem [#allocation8], %s1120
        // Predicated region
        $region45: #{tpu_custom_call.1} parent=35 // pred_check
          %p1122 = pneg %p143
        $region46: #{tpu_custom_call.1} parent=35 // pred_check_branch
          %1124 = sbr.rel (%p1122) target = $region48
        $region47: #{tpu_custom_call.1} parent=35 // pred_region
          %s1126 = ssub.s32 256, 256
          %1127 = vsyncadd %s1118, %s1126
          %s1128 = smul.addr %s26, 2
          %s1129 = smul.addr %s1128, 128
          %s1130 = scalar_lea.hbm %s4, %s1129
          %s1132 = sshll.u32 %s1121, 4
          %s1133 = int_to_ptr.vmem [resolvable:$true] %s1132
          %1135 = dma.vmem_to_hbm [thread:$0]  %s1133, 256, %s1130, %s1118
        $region48: #{tpu_custom_call.1} parent=35 // pred_fallthru
          _
      $region36: #{tpu_custom_call.1} parent=5 // pred_fallthru
        _
      %p1136 = scmp.le.s32.totalorder 2, %s17
      // Predicated region
      $region49: #{tpu_custom_call.1} parent=5 // pred_check
        %p1137 = pneg %p1136
      $region50: #{tpu_custom_call.1} parent=5 // pred_check_branch
        %1139 = sbr.rel (%p1137) target = $region52
      $region51: #{tpu_custom_call.1} parent=5 // pred_region
        %s1140 = ssub.s32 %s17, 2
        // Predicated region
        $region53: #{tpu_custom_call.1} parent=51 // pred_check
          %p1141 = pneg %p149
        $region54: #{tpu_custom_call.1} parent=51 // pred_check_branch
          %1143 = sbr.rel (%p1141) target = $region56
        $region55: #{tpu_custom_call.1} parent=51 // pred_region
          %s1144 = sand.u32 %s134, 1
          %s1145 = scalar_lea.sflag [#allocation5], %s1144
          %s1146 = sand.u32 %s134, 1
          %s1147 = smul.addr %s1146, 16
          %s1148 = scalar_lea.vmem [#allocation8], %s1147
          %1149 = dma.done %s1145, 256
        $region56: #{tpu_custom_call.1} parent=51 // pred_fallthru
          _
      $region52: #{tpu_custom_call.1} parent=5 // pred_fallthru
        _
    $region6: #{tpu_custom_call.1} parent=1 // loop_footer
      %s21 = sadd.s32 1, %s17
    $region7: #{tpu_custom_call.1} parent=1 // loop_footer_branch
      %16 = sbr.rel target = $region3
    $region8: #{tpu_custom_call.1} parent=1 // loop_exit
      _
    %1150 = vsyncpa [#allocation4], 1
    %s1151 = scalar_lea.sflag [#allocation4], 1
    %1152 = vsyncpa %s1151, 1
    %1153 = vsyncpa [#allocation7], 1
    %1154 = vsyncpa [#allocation5], 1
    %s1155 = scalar_lea.sflag [#allocation5], 1
    %1156 = vsyncpa %s1155, 1

</llo_original>
